<compile_context>
chip_gen: v5e
topology: v5e:2x2
jax: 0.10.0
libtpu: 0.0.40
codegen_flags: <defaults>
</compile_context>

<pallas_src>
import functools

import jax
import jax.numpy as jnp
from jax.experimental import pallas as pl
from jax.experimental.pallas import tpu as pltpu


def _round_up(x, m):
    return (x + m - 1) // m * m


def sender_kernel(x_ref, wt_ref, bt_ref, wf_ref, bf_ref, out_ref):
    """One grid step == TB graphs (target rows already gathered).

    x_ref   : (TB, F)  gathered target-node features, one row per graph
    wt_ref  : (F, E)   Transform (per-node linear stand-in) weight
    bt_ref  : (1, E)   Transform bias
    wf_ref  : (E, H)   fc weight
    bf_ref  : (1, H)   fc bias
    out_ref : (TB, H)  fc(Transform(x_target)) per graph
    """
    TB, F = x_ref.shape
    x = x_ref[...]

    # Transform stand-in applied only to the gathered target rows.  F is tiny
    # (4 here), so F unrolled VPU FMAs beat pushing a K=F matvec through the
    # 128/256-deep MXU (push/pop latency is pure overhead at that depth).
    if F <= 8:  # static Python branch
        emb = x[:, 0:1] * wt_ref[0:1, :]
        for k in range(1, F):
            emb = emb + x[:, k:k + 1] * wt_ref[k:k + 1, :]
    else:
        emb = jnp.dot(x, wt_ref[...], preferred_element_type=jnp.float32)
    emb = emb + bt_ref[...]                                           # (TB, E)

    # fc(target_embedding): (TB, E) @ (E, H) + bias.
    out = jnp.dot(emb, wf_ref[...],
                  preferred_element_type=jnp.float32) + bf_ref[...]   # (TB, H)
    out_ref[...] = out.astype(out_ref.dtype)


@functools.partial(jax.jit, static_argnames=("block_b",))
def sender_transform(node_feats, target_node_idx, wt, bt, wf, bf, *, block_b=1024):
    B, N, F = node_feats.shape
    E, H = wf.shape
    assert wt.shape == (F, E)

    # Gather the target node of every graph BEFORE the kernel (the `+ ptr[:-1]`
    # offset of the torch code is implicit in the (graph, node) layout): only
    # (B, F) is DMA'd into VMEM instead of (B, N, F).
    # TODO(synk): valid only while `Transform` is the per-node linear stand-in.
    idx = target_node_idx.astype(jnp.int32).reshape(B, 1, 1)
    x_t = jnp.take_along_axis(node_feats, idx, axis=1).reshape(B, F)  # (B, F)

    bt2 = bt.reshape(1, E)
    bf2 = bf.reshape(1, H)

    # Block selection: large blocks amortize per-step pipeline overhead; an even
    # number of blocks (>=2 when there is enough work) keeps v7x's two
    # TensorCores balanced.  Harmless on v5e/v6e (single TC).
    B8 = _round_up(B, 8)
    if B8 <= block_b:
        TB = B8 if B8 <= 256 else _round_up(pl.cdiv(B8, 2), 8)
    else:
        nb = pl.cdiv(B8, block_b)
        if nb % 2:
            nb += 1
        TB = _round_up(pl.cdiv(B8, nb), 8)
    nb = pl.cdiv(B, TB)
    Bp = nb * TB
    if Bp != B:
        # Only the tiny gathered rows are padded, never the full node_feats.
        x_t = jnp.pad(x_t, ((0, Bp - B), (0, 0)))

    out = pl.pallas_call(
        sender_kernel,
        out_shape=jax.ShapeDtypeStruct((Bp, H), jnp.float32),
        grid_spec=pltpu.PrefetchScalarGridSpec(
            num_scalar_prefetch=0,
            grid=(nb,),
            in_specs=[
                pl.BlockSpec((TB, F), lambda b: (b, 0)),  # gathered target rows
                pl.BlockSpec((F, E), lambda b: (0, 0)),   # Transform weight (shared)
                pl.BlockSpec((1, E), lambda b: (0, 0)),   # Transform bias   (shared)
                pl.BlockSpec((E, H), lambda b: (0, 0)),   # fc weight        (shared)
                pl.BlockSpec((1, H), lambda b: (0, 0)),   # fc bias          (shared)
            ],
            # Output kept at its true width H (no 128-lane padding): 4x less HBM
            # writeback than a padded slab at H=32.
            out_specs=pl.BlockSpec((TB, H), lambda b: (b, 0)),
        ),
        compiler_params=pltpu.CompilerParams(dimension_semantics=("parallel",)),
    )(x_t, wt, bt2, wf, bf2)

    # Strip batch padding (cheap wrapper slice).
    return out[:B]


def reference(node_feats, target_node_idx, wt, bt, wf, bf):
    """Pure-JAX reference mirroring the torch forward."""
    B = node_feats.shape[0]
    h = node_feats @ wt + bt.reshape(1, 1, -1)                 # Transform -> (B, N, E)
    target_emb = h[jnp.arange(B), target_node_idx]             # h[tgt + ptr] -> (B, E)
    return target_emb @ wf + bf.reshape(1, -1)                 # fc -> (B, H)


if __name__ == "__main__":
    # Small shapes consistent with the module.
    B = 2            # data.num_graphs
    N = 8            # nodes per graph
    F = 4            # num_node_features
    E = 32           # embedding_size
    H = 32           # hidden_size
    heads = 4        # unused by the simplified Transform (see TODO above)
    temperature = 1.0  # stored by the module, unused in forward

    key = jax.random.PRNGKey(0)
    k_x, k_t, k_wt, k_bt, k_wf, k_bf = jax.random.split(key, 6)

    node_feats = jax.random.normal(k_x, (B, N, F), dtype=jnp.float32)
    target_node_idx = jax.random.randint(k_t, (B,), 0, N, dtype=jnp.int32)

    # Deterministic parameter init (synthetic, not loaded from a checkpoint).
    wt = jax.random.normal(k_wt, (F, E), dtype=jnp.float32) * 0.1   # Transform proj
    bt = jax.random.normal(k_bt, (E,), dtype=jnp.float32) * 0.1
    wf = jax.random.normal(k_wf, (E, H), dtype=jnp.float32) * 0.1   # fc weight (in, out)
    bf = jax.random.normal(k_bf, (H,), dtype=jnp.float32) * 0.1

    out = jax.block_until_ready(
        sender_transform(node_feats, target_node_idx, wt, bt, wf, bf))
    ref = reference(node_feats, target_node_idx, wt, bt, wf, bf)
    assert out.shape == (B, H), out.shape
    assert jnp.allclose(out, ref, atol=1e-5, rtol=1e-5), jnp.max(jnp.abs(out - ref))

    # Secondary check: multi-block path (B not a multiple of the block size)
    # exercising the balanced grid, batch padding and slicing logic.
    B2 = 260
    k2_x, k2_t = jax.random.split(jax.random.PRNGKey(1), 2)
    node_feats2 = jax.random.normal(k2_x, (B2, N, F), dtype=jnp.float32)
    target_idx2 = jax.random.randint(k2_t, (B2,), 0, N, dtype=jnp.int32)
    out2 = jax.block_until_ready(
        sender_transform(node_feats2, target_idx2, wt, bt, wf, bf))
    ref2 = reference(node_feats2, target_idx2, wt, bt, wf, bf)
    assert out2.shape == (B2, H), out2.shape
    assert jnp.allclose(out2, ref2, atol=1e-5, rtol=1e-5), jnp.max(jnp.abs(out2 - ref2))

    print("KERNEL_OK")
</pallas_src>

<mosaic_0001>
module attributes {stable_mosaic.version = 11 : i64} {
  func.func @sender_kernel(%arg0: i32, %arg1: memref<8x4xf32, #tpu.memory_space<vmem>>, %arg2: memref<4x32xf32, #tpu.memory_space<vmem>>, %arg3: memref<1x32xf32, #tpu.memory_space<vmem>>, %arg4: memref<32x32xf32, #tpu.memory_space<vmem>>, %arg5: memref<1x32xf32, #tpu.memory_space<vmem>>, %arg6: memref<8x32xf32, #tpu.memory_space<vmem>>) attributes {dimension_semantics = [#tpu.dimension_semantics<parallel>], iteration_bounds = array<i64: 1>, scalar_prefetch = 0 : i64, scratch_operands = 0 : i64, tpu.core_type = #tpu.core_type<tc>, window_params = [{transform_indices = @transform_0, window_bounds = array<i64: 8, 4>}, {pipeline_mode = #tpu.pipeline_mode<synchronous>, transform_indices = @transform_1, window_bounds = array<i64: 4, 32>}, {pipeline_mode = #tpu.pipeline_mode<synchronous>, transform_indices = @transform_2, window_bounds = array<i64: 1, 32>}, {pipeline_mode = #tpu.pipeline_mode<synchronous>, transform_indices = @transform_3, window_bounds = array<i64: 32, 32>}, {pipeline_mode = #tpu.pipeline_mode<synchronous>, transform_indices = @transform_4, window_bounds = array<i64: 1, 32>}, {transform_indices = @transform_5, window_bounds = array<i64: 8, 32>}]} {
    %c0 = arith.constant 0 : index
    %c0_0 = arith.constant 0 : index
    %0 = vector.load %arg1[%c0, %c0_0] : memref<8x4xf32, #tpu.memory_space<vmem>>, vector<8x4xf32>
    %1 = vector.extract_strided_slice %0 {offsets = [0, 0], sizes = [8, 1], strides = [1, 1]} : vector<8x4xf32> to vector<8x1xf32>
    %c0_1 = arith.constant 0 : index
    %c0_2 = arith.constant 0 : index
    %2 = vector.load %arg2[%c0_1, %c0_2] : memref<4x32xf32, #tpu.memory_space<vmem>>, vector<1x32xf32>
    %3 = vector.broadcast %1 : vector<8x1xf32> to vector<8x32xf32>
    %4 = vector.broadcast %2 : vector<1x32xf32> to vector<8x32xf32>
    %5 = arith.mulf %3, %4 : vector<8x32xf32>
    %6 = vector.extract_strided_slice %0 {offsets = [0, 1], sizes = [8, 1], strides = [1, 1]} : vector<8x4xf32> to vector<8x1xf32>
    %c1 = arith.constant 1 : index
    %c0_3 = arith.constant 0 : index
    %7 = vector.load %arg2[%c1, %c0_3] : memref<4x32xf32, #tpu.memory_space<vmem>>, vector<1x32xf32>
    %8 = vector.broadcast %6 : vector<8x1xf32> to vector<8x32xf32>
    %9 = vector.broadcast %7 : vector<1x32xf32> to vector<8x32xf32>
    %10 = arith.mulf %8, %9 : vector<8x32xf32>
    %11 = arith.addf %5, %10 : vector<8x32xf32>
    %12 = vector.extract_strided_slice %0 {offsets = [0, 2], sizes = [8, 1], strides = [1, 1]} : vector<8x4xf32> to vector<8x1xf32>
    %c2 = arith.constant 2 : index
    %c0_4 = arith.constant 0 : index
    %13 = vector.load %arg2[%c2, %c0_4] : memref<4x32xf32, #tpu.memory_space<vmem>>, vector<1x32xf32>
    %14 = vector.broadcast %12 : vector<8x1xf32> to vector<8x32xf32>
    %15 = vector.broadcast %13 : vector<1x32xf32> to vector<8x32xf32>
    %16 = arith.mulf %14, %15 : vector<8x32xf32>
    %17 = arith.addf %11, %16 : vector<8x32xf32>
    %18 = vector.extract_strided_slice %0 {offsets = [0, 3], sizes = [8, 1], strides = [1, 1]} : vector<8x4xf32> to vector<8x1xf32>
    %c3 = arith.constant 3 : index
    %c0_5 = arith.constant 0 : index
    %19 = vector.load %arg2[%c3, %c0_5] : memref<4x32xf32, #tpu.memory_space<vmem>>, vector<1x32xf32>
    %20 = vector.broadcast %18 : vector<8x1xf32> to vector<8x32xf32>
    %21 = vector.broadcast %19 : vector<1x32xf32> to vector<8x32xf32>
    %22 = arith.mulf %20, %21 : vector<8x32xf32>
    %23 = arith.addf %17, %22 : vector<8x32xf32>
    %c0_6 = arith.constant 0 : index
    %c0_7 = arith.constant 0 : index
    %24 = vector.load %arg3[%c0_6, %c0_7] : memref<1x32xf32, #tpu.memory_space<vmem>>, vector<1x32xf32>
    %25 = vector.broadcast %24 : vector<1x32xf32> to vector<8x32xf32>
    %26 = arith.addf %23, %25 : vector<8x32xf32>
    %c0_8 = arith.constant 0 : index
    %c0_9 = arith.constant 0 : index
    %27 = vector.load %arg4[%c0_8, %c0_9] : memref<32x32xf32, #tpu.memory_space<vmem>>, vector<32x32xf32>
    %cst = arith.constant dense<0.000000e+00> : vector<8x32xf32>
    %28 = tpu.matmul %26, %27, %cst {dimension_numbers = #tpu.dot_dimension_numbers<[1], [0], [0], [1], [0, 0, 1, 1], [], []>} : vector<8x32xf32>, vector<32x32xf32>, vector<8x32xf32> -> vector<8x32xf32>
    %c0_10 = arith.constant 0 : index
    %c0_11 = arith.constant 0 : index
    %29 = vector.load %arg5[%c0_10, %c0_11] : memref<1x32xf32, #tpu.memory_space<vmem>>, vector<1x32xf32>
    %30 = vector.broadcast %29 : vector<1x32xf32> to vector<8x32xf32>
    %31 = arith.addf %28, %30 : vector<8x32xf32>
    %c0_12 = arith.constant 0 : index
    %c0_13 = arith.constant 0 : index
    %32 = vector.load %arg6[%c0_12, %c0_13] : memref<8x32xf32, #tpu.memory_space<vmem>>, vector<8x32xf32>
    tpu.vector_store %arg6[%c0_12, %c0_13], %31 {strides = array<i32>} : memref<8x32xf32, #tpu.memory_space<vmem>>, vector<8x32xf32>,
    return
  }
  func.func @transform_0(%arg0: i32) -> (i32, i32) {
    %c0_i32 = arith.constant 0 : i32
    %c0_i32_0 = arith.constant 0 : i32
    return %arg0, %c0_i32 : i32, i32
  }
  func.func @transform_1(%arg0: i32) -> (i32, i32) {
    %c0_i32 = arith.constant 0 : i32
    %c0_i32_0 = arith.constant 0 : i32
    %c0_i32_1 = arith.constant 0 : i32
    return %c0_i32, %c0_i32_0 : i32, i32
  }
  func.func @transform_2(%arg0: i32) -> (i32, i32) {
    %c0_i32 = arith.constant 0 : i32
    %c0_i32_0 = arith.constant 0 : i32
    %c0_i32_1 = arith.constant 0 : i32
    return %c0_i32, %c0_i32_0 : i32, i32
  }
  func.func @transform_3(%arg0: i32) -> (i32, i32) {
    %c0_i32 = arith.constant 0 : i32
    %c0_i32_0 = arith.constant 0 : i32
    %c0_i32_1 = arith.constant 0 : i32
    return %c0_i32, %c0_i32_0 : i32, i32
  }
  func.func @transform_4(%arg0: i32) -> (i32, i32) {
    %c0_i32 = arith.constant 0 : i32
    %c0_i32_0 = arith.constant 0 : i32
    %c0_i32_1 = arith.constant 0 : i32
    return %c0_i32, %c0_i32_0 : i32, i32
  }
  func.func @transform_5(%arg0: i32) -> (i32, i32) {
    %c0_i32 = arith.constant 0 : i32
    %c0_i32_0 = arith.constant 0 : i32
    return %arg0, %c0_i32 : i32, i32
  }
}

</mosaic_0001>

<llo_original>
// kernel: sender_transform.1
$region0: #{sender_transform.1}
  #allocation0 [shape = 'u32[]', space=smem, size = 0x4, offset = 0x4, fixed_abs, tag = 'smem constant byte address 0x4 - core index']
  #allocation1 [shape = 'u32[72,128]{1,0:T(1,128)}', space=vmem, size = 0x9000, scoped, tag = 'internal scratch']
  %s0 = inlined_call_operand.vmem [shape: f32[8,4], index: 0, kind: input, shape index: {}]
  %s1 = inlined_call_operand.vmem [shape: f32[4,32], index: 1, kind: input, shape index: {}]
  %s2 = inlined_call_operand.vmem [shape: f32[1,32], index: 2, kind: input, shape index: {}]
  %s3 = inlined_call_operand.vmem [shape: f32[32,32], index: 3, kind: input, shape index: {}]
  %s4 = inlined_call_operand.vmem [shape: f32[1,32], index: 4, kind: input, shape index: {}]
  %s5 = inlined_call_operand.vmem [shape: f32[8,32], index: 5, kind: output, shape index: {}]
  %s6 = sld [smem:[#allocation0]]
  $region30: #{sender_transform.1} parent=0
    _
  %s8 = ssub.s32 1, %s6
  %s9 = scalar_select 0, %s8, %s6
  // Predicated region
  $region2: #{sender_transform.1} parent=0 // pred_check
    _
  $region3: #{sender_transform.1} parent=0 // pred_check_branch
    %11 = sbr.rel (0) target = $region5
  $region4: #{sender_transform.1} parent=0 // pred_region
    _
  $region5: #{sender_transform.1} parent=0 // pred_fallthru
    _
  // Predicated region
  $region6: #{sender_transform.1} parent=0 // pred_check
    _
  $region7: #{sender_transform.1} parent=0 // pred_check_branch
    %13 = sbr.rel (0) target = $region9
  $region8: #{sender_transform.1} parent=0 // pred_region
    _
  $region9: #{sender_transform.1} parent=0 // pred_fallthru
    _
  // Predicated region
  $region10: #{sender_transform.1} parent=0 // pred_check
    _
  $region11: #{sender_transform.1} parent=0 // pred_check_branch
    %15 = sbr.rel (0) target = $region13
  $region12: #{sender_transform.1} parent=0 // pred_region
    _
  $region13: #{sender_transform.1} parent=0 // pred_fallthru
    _
  // Predicated region
  $region14: #{sender_transform.1} parent=0 // pred_check
    _
  $region15: #{sender_transform.1} parent=0 // pred_check_branch
    %17 = sbr.rel (0) target = $region17
  $region16: #{sender_transform.1} parent=0 // pred_region
    _
  $region17: #{sender_transform.1} parent=0 // pred_fallthru
    _
  // Predicated region
  $region18: #{sender_transform.1} parent=0 // pred_check
    _
  $region19: #{sender_transform.1} parent=0 // pred_check_branch
    %19 = sbr.rel (0) target = $region21
  $region20: #{sender_transform.1} parent=0 // pred_region
    _
  $region21: #{sender_transform.1} parent=0 // pred_fallthru
    _
  %v20 = vld [vmem:[%s0] sm:$0xff]
  %v21 = vld [vmem:[%s1] sm:$0x1]
  %23 = vset.pattern.permute.xlu0 0
  %24 = vperm.xlu0 %23, %v20
  %v25 = vpop.permute.xlu0 %24
  %v27 = vperm.slane %v21, 0
  %v28 = vmul.f32 %v25, %v27
  %v29 = vld [vmem:[%s1 + $0x1] sm:$0x1]
  %30 = vset.pattern.permute.xlu0 1
  %31 = vperm.xlu0 %30, %v20
  %v32 = vpop.permute.xlu0 %31
  %v34 = vperm.slane %v29, 0
  %v35 = vmul.f32 %v32, %v34
  %v36 = vadd.f32 %v28, %v35
  %v37 = vld [vmem:[%s1 + $0x2] sm:$0x1]
  %38 = vset.pattern.permute.xlu0 2
  %39 = vperm.xlu0 %38, %v20
  %v40 = vpop.permute.xlu0 %39
  %v42 = vperm.slane %v37, 0
  %v43 = vmul.f32 %v40, %v42
  %v44 = vadd.f32 %v36, %v43
  %v45 = vld [vmem:[%s1 + $0x3] sm:$0x1]
  %46 = vset.pattern.permute.xlu0 3
  %47 = vperm.xlu0 %46, %v20
  %v48 = vpop.permute.xlu0 %47
  %v50 = vperm.slane %v45, 0
  %v51 = vmul.f32 %v48, %v50
  %v52 = vadd.f32 %v44, %v51
  %v53 = vld [vmem:[%s2] sm:$0x1]
  %v55 = vperm.slane %v53, 0
  %v57 = vadd.f32 %v52, %v55
  %v58 = vld [vmem:[%s3] sm:$0xff]
  %v59 = vld [vmem:[%s3 + $0x8] sm:$0xff]
  %v60 = vld [vmem:[%s3 + $0x10] sm:$0xff]
  %v61 = vld [vmem:[%s3 + $0x18] sm:$0xff]
  %v62 = vld [vmem:[%s4] sm:$0x1]
  %v64 = vperm.slane %v62, 0
  %vm66 = vcmask 261120
  %v68 = vsel %vm66, %v57, 0
  %70 = vmatpush.msra.mxu0 0.0
  %71 = vmatpush.msra.mxu0 0.0
  %72 = vmatpush.msra.mxu0 0.0
  %73 = vmatpush.msra.mxu0 0.0
  %74 = vmatpush.msra.mxu0 0.0
  %75 = vmatpush.msra.mxu0 0.0
  %76 = vmatpush.msra.mxu0 0.0
  %77 = vmatpush.msra.mxu0 0.0
  %78 = vmatpush.msra.mxu0 0.0
  %79 = vmatpush.msra.mxu0 0.0
  %80 = vmatpush.msra.mxu0 0.0
  %81 = vmatpush.msra.mxu0 0.0
  %82 = vmatpush.msra.mxu0 %v61
  %83 = vmatpush.msra.mxu0 %v60
  %84 = vmatpush.msra.mxu0 %v59
  %85 = vmatpush.msra.mxu0 %v58
  %86 = vmatmul.f32.gmra.mxu0 %v68
  %v87 = vpop.f32.mrf.mxu0
  %v88 = vadd.f32 %v64, %v87
  %89 = vdwg.mxu0
  %90 = vst.msk [vmem:[%s5] sm:$0xff] %vm66, %v88
  // Predicated region
  $region22: #{sender_transform.1} parent=0 // pred_check
    _
  $region23: #{sender_transform.1} parent=0 // pred_check_branch
    %92 = sbr.rel (0) target = $region25
  $region24: #{sender_transform.1} parent=0 // pred_region
    _
  $region25: #{sender_transform.1} parent=0 // pred_fallthru
    _
  // Predicated region
  $region26: #{sender_transform.1} parent=0 // pred_check
    _
  $region27: #{sender_transform.1} parent=0 // pred_check_branch
    %94 = sbr.rel (0) target = $region29
  $region28: #{sender_transform.1} parent=0 // pred_region
    _
  $region29: #{sender_transform.1} parent=0 // pred_fallthru
    _

</llo_original>
